<compile_context>
chip_gen: v7x
topology: tpu7x:2x2x1
jax: 0.10.0
libtpu: 0.0.40
codegen_flags: <defaults>
</compile_context>

<pallas_src>
import functools

import jax
import jax.numpy as jnp
from jax import lax
from jax.experimental import pallas as pl
from jax.experimental.pallas import tpu as pltpu

N_STACKS = 3
EPS = 1e-6
_MIN_SPLIT_ROWS = 512     # if M >= 2 * this, guarantee >= 2 grid blocks (v7x 2 TCs)


def _round_up(x, m):
    return ((x + m - 1) // m) * m


def _stack_kernel(x_ref, w1_ref, b1_ref, w2_ref, b2_ref, g_ref, beta_ref, o_ref,
                  *, n_stacks, matmul_dtype):
    # Residual stream stays f32; only the MXU operands are (optionally) bf16.
    x = x_ref[...].astype(jnp.float32)          # (tm, D)
    w1 = w1_ref[...]                            # (D, H) already in matmul_dtype
    w2 = w2_ref[...]                            # (H, D) already in matmul_dtype

    # Keep biases as (1, H)/(1, D): the add broadcasts along sublanes per use,
    # which is nearly free on the VPU and avoids holding a (tm, H) broadcast
    # live across the unrolled layer loop (vreg-file blowup / spills).
    b1 = b1_ref[...].astype(jnp.float32)        # (1, H)
    b2 = b2_ref[...].astype(jnp.float32)        # (1, D)
    gamma = g_ref[...].astype(jnp.float32)      # (1, D)
    beta = beta_ref[...].astype(jnp.float32)    # (1, D)

    # --- N identical layers (same weights, applied sequentially) ---
    def layer_body(_, xc):
        h = jnp.dot(xc.astype(matmul_dtype), w1,
                    preferred_element_type=jnp.float32) + b1
        h = jnp.maximum(h, 0.0)
        ffn = jnp.dot(h.astype(matmul_dtype), w2,
                      preferred_element_type=jnp.float32) + b2
        return xc + ffn

    x = lax.fori_loop(0, n_stacks, layer_body, x, unroll=True)

    # --- LayerNorm (annotated-transformer form):
    #     a_2 * (x - mean) / (std_unbiased + eps) + b_2
    d = x.shape[-1]
    mean = jnp.mean(x, axis=-1, keepdims=True)
    centered = x - mean
    var_unbiased = jnp.sum(centered * centered, axis=-1, keepdims=True) / (d - 1)
    std = jnp.sqrt(var_unbiased)
    inv = pl.reciprocal(std + EPS, approx=True)   # EUP vrcp slot, co-issues w/ VPU
    o_ref[...] = (gamma * centered * inv + beta).astype(o_ref.dtype)


def stack_forward(x, w1, b1, w2, b2, gamma, beta, *, n_stacks=N_STACKS, tm=2048,
                  matmul_dtype=jnp.bfloat16):
    """x: (B, S, D) float32. Returns (B, S, D)."""
    B, S, D = x.shape
    H = w1.shape[1]
    M = B * S

    # Row-tile selection:
    #  * large default (amortizes the ~0.35us/step overhead),
    #  * but for large M never collapse to a single block so v7x's 2 TCs both
    #    get work (cap at ceil(M/2)),
    #  * for tiny inputs shrink to the 8-aligned row count instead of padding.
    tm_eff = min(tm, _round_up(M, 8))
    if M >= 2 * _MIN_SPLIT_ROWS:
        tm_eff = min(tm_eff, _round_up(pl.cdiv(M, 2), 8))
    tm_eff = max(8, _round_up(tm_eff, 8))
    grid = pl.cdiv(M, tm_eff)

    # No wrapper-side padding: Pallas masks the ragged last block's writes, and
    # every row is independent (matmuls + per-row LayerNorm), so stale rows in
    # the boundary tile never contaminate valid output rows.
    x2 = x.reshape(M, D).astype(jnp.float32)

    # Cast weights to the MXU dtype once here (not per grid step in-kernel).
    w1c = w1.astype(matmul_dtype)
    w2c = w2.astype(matmul_dtype)
    b1_2 = b1.reshape(1, H).astype(jnp.float32)
    b2_2 = b2.reshape(1, D).astype(jnp.float32)
    g_2 = gamma.reshape(1, D).astype(jnp.float32)
    be_2 = beta.reshape(1, D).astype(jnp.float32)

    kernel = functools.partial(_stack_kernel, n_stacks=n_stacks,
                               matmul_dtype=matmul_dtype)

    # VMEM budget: double-buffered x/out tiles (f32) + resident weights (+ some
    # headroom for the (tm, H) FFN intermediate). Clamped to 48 MiB so v7x's
    # 64 MiB/TC VMEM keeps internal-scratch headroom.
    f32b = 4
    wb = jnp.dtype(matmul_dtype).itemsize
    tile_bytes = 2 * 2 * tm_eff * D * f32b                      # x + out, 2 bufs each
    weight_bytes = 2 * ((D * H + H * D) * wb + (H + 3 * D) * f32b)
    scratch_bytes = 2 * tm_eff * max(H, D) * f32b               # FFN intermediate etc.
    vmem_limit = int(min(max(3 * (tile_bytes + weight_bytes + scratch_bytes),
                             16 * 2**20),
                         48 * 2**20))

    cost = pl.CostEstimate(
        flops=4 * n_stacks * M * D * H,
        transcendentals=2 * M,
        bytes_accessed=2 * M * D * f32b + (D * H + H * D) * wb,
    )

    out = pl.pallas_call(
        kernel,
        out_shape=jax.ShapeDtypeStruct((M, D), x.dtype),
        grid_spec=pltpu.PrefetchScalarGridSpec(
            num_scalar_prefetch=0,
            grid=(grid,),
            in_specs=[
                pl.BlockSpec((tm_eff, D), lambda i: (i, 0)),   # x row tile
                pl.BlockSpec((D, H), lambda i: (0, 0)),        # W1 (shared, resident)
                pl.BlockSpec((1, H), lambda i: (0, 0)),        # b1
                pl.BlockSpec((H, D), lambda i: (0, 0)),        # W2
                pl.BlockSpec((1, D), lambda i: (0, 0)),        # b2
                pl.BlockSpec((1, D), lambda i: (0, 0)),        # gamma (a_2)
                pl.BlockSpec((1, D), lambda i: (0, 0)),        # beta  (b_2)
            ],
            out_specs=pl.BlockSpec((tm_eff, D), lambda i: (i, 0)),
        ),
        compiler_params=pltpu.CompilerParams(
            dimension_semantics=("parallel",),   # lets v7x shard blocks on 2 TCs
            vmem_limit_bytes=vmem_limit,
        ),
        cost_estimate=cost,
    )(x2, w1c, b1_2, w2c, b2_2, g_2, be_2)

    return out.reshape(B, S, D)


def stack_reference(x, w1, b1, w2, b2, gamma, beta, *, n_stacks=N_STACKS):
    """Pure-JAX reference for correctness check (f32 semantics)."""
    xc = x.astype(jnp.float32)
    for _ in range(n_stacks):
        h = jnp.maximum(xc @ w1 + b1, 0.0)
        xc = xc + h @ w2 + b2
    mean = jnp.mean(xc, axis=-1, keepdims=True)
    std = jnp.std(xc, axis=-1, keepdims=True, ddof=1)
    return gamma * (xc - mean) / (std + EPS) + beta


def _make_params(key, D, H):
    k1, k2, k3, k4 = jax.random.split(key, 4)
    w1 = jax.random.normal(k1, (D, H), dtype=jnp.float32) * 0.05
    b1 = jax.random.normal(k2, (H,), dtype=jnp.float32) * 0.01
    w2 = jax.random.normal(k3, (H, D), dtype=jnp.float32) * 0.05
    b2 = jax.random.normal(k4, (D,), dtype=jnp.float32) * 0.01
    gamma = jnp.ones((D,), dtype=jnp.float32)   # layerNorm a_2
    beta = jnp.zeros((D,), dtype=jnp.float32)   # layerNorm b_2
    return w1, b1, w2, b2, gamma, beta


if __name__ == "__main__":
    key = jax.random.PRNGKey(0)
    D, H = 128, 256  # model dim (layer.size) lane-dense; FFN hidden

    kp, kx1, kx2 = jax.random.split(key, 3)
    params = _make_params(kp, D, H)

    # Case 1: small demo shape (B=2, S=8) -> single small tile.
    #   f32 MXU path (exact-ish) then bf16 default path.
    x_small = jax.random.normal(kx1, (2, 8, D), dtype=jnp.float32)
    ref = stack_reference(x_small, *params)

    out_f32 = jax.block_until_ready(
        stack_forward(x_small, *params, matmul_dtype=jnp.float32))
    assert out_f32.shape == x_small.shape
    assert jnp.allclose(out_f32, ref, atol=5e-3, rtol=5e-3), "f32 small-case mismatch"

    out_bf16 = jax.block_until_ready(stack_forward(x_small, *params))
    assert jnp.allclose(out_bf16, ref, atol=3e-2, rtol=3e-2), "bf16 small-case mismatch"

    # Case 2: larger row count with a ragged tail (M=2404 -> 2 blocks of 1208,
    # second block masked), exercising the multi-block parallel grid and the
    # padded boundary handling without any wrapper-side pad/slice.
    x_big = jax.random.normal(kx2, (4, 601, D), dtype=jnp.float32)
    ref_big = stack_reference(x_big, *params)

    out_big_f32 = jax.block_until_ready(
        stack_forward(x_big, *params, matmul_dtype=jnp.float32))
    assert jnp.allclose(out_big_f32, ref_big, atol=5e-3, rtol=5e-3), "f32 big-case mismatch"

    # bf16 MXU operands (v5e/v6e/v7x fast path), f32 accumulation/residual/LN.
    out_big_bf16 = jax.block_until_ready(stack_forward(x_big, *params))
    assert jnp.allclose(out_big_bf16, ref_big, atol=3e-2, rtol=3e-2), "bf16 big-case mismatch"

    print("KERNEL_OK")
</pallas_src>

<mosaic_0001>
module attributes {stable_mosaic.version = 11 : i64} {
  func.func @_stack_kernel(%arg0: i32, %arg1: memref<16x128xf32, #tpu.memory_space<vmem>>, %arg2: memref<128x256xf32, #tpu.memory_space<vmem>>, %arg3: memref<1x256xf32, #tpu.memory_space<vmem>>, %arg4: memref<256x128xf32, #tpu.memory_space<vmem>>, %arg5: memref<1x128xf32, #tpu.memory_space<vmem>>, %arg6: memref<1x128xf32, #tpu.memory_space<vmem>>, %arg7: memref<1x128xf32, #tpu.memory_space<vmem>>, %arg8: memref<16x128xf32, #tpu.memory_space<vmem>>) attributes {dimension_semantics = [#tpu.dimension_semantics<parallel>], iteration_bounds = array<i64: 1>, scalar_prefetch = 0 : i64, scratch_operands = 0 : i64, tpu.core_type = #tpu.core_type<tc>, window_params = [{transform_indices = @transform_0, window_bounds = array<i64: 16, 128>}, {pipeline_mode = #tpu.pipeline_mode<synchronous>, transform_indices = @transform_1, window_bounds = array<i64: 128, 256>}, {pipeline_mode = #tpu.pipeline_mode<synchronous>, transform_indices = @transform_2, window_bounds = array<i64: 1, 256>}, {pipeline_mode = #tpu.pipeline_mode<synchronous>, transform_indices = @transform_3, window_bounds = array<i64: 256, 128>}, {pipeline_mode = #tpu.pipeline_mode<synchronous>, transform_indices = @transform_4, window_bounds = array<i64: 1, 128>}, {pipeline_mode = #tpu.pipeline_mode<synchronous>, transform_indices = @transform_5, window_bounds = array<i64: 1, 128>}, {pipeline_mode = #tpu.pipeline_mode<synchronous>, transform_indices = @transform_6, window_bounds = array<i64: 1, 128>}, {transform_indices = @transform_7, window_bounds = array<i64: 16, 128>}]} {
    %c0 = arith.constant 0 : index
    %c0_0 = arith.constant 0 : index
    %0 = vector.load %arg1[%c0, %c0_0] : memref<16x128xf32, #tpu.memory_space<vmem>>, vector<16x128xf32>
    %c0_1 = arith.constant 0 : index
    %c0_2 = arith.constant 0 : index
    %1 = vector.load %arg2[%c0_1, %c0_2] : memref<128x256xf32, #tpu.memory_space<vmem>>, vector<128x256xf32>
    %c0_3 = arith.constant 0 : index
    %c0_4 = arith.constant 0 : index
    %2 = vector.load %arg4[%c0_3, %c0_4] : memref<256x128xf32, #tpu.memory_space<vmem>>, vector<256x128xf32>
    %c0_5 = arith.constant 0 : index
    %c0_6 = arith.constant 0 : index
    %3 = vector.load %arg3[%c0_5, %c0_6] : memref<1x256xf32, #tpu.memory_space<vmem>>, vector<1x256xf32>
    %c0_7 = arith.constant 0 : index
    %c0_8 = arith.constant 0 : index
    %4 = vector.load %arg5[%c0_7, %c0_8] : memref<1x128xf32, #tpu.memory_space<vmem>>, vector<1x128xf32>
    %c0_9 = arith.constant 0 : index
    %c0_10 = arith.constant 0 : index
    %5 = vector.load %arg6[%c0_9, %c0_10] : memref<1x128xf32, #tpu.memory_space<vmem>>, vector<1x128xf32>
    %c0_11 = arith.constant 0 : index
    %c0_12 = arith.constant 0 : index
    %6 = vector.load %arg7[%c0_11, %c0_12] : memref<1x128xf32, #tpu.memory_space<vmem>>, vector<1x128xf32>
    %c0_i32 = arith.constant 0 : i32
    %cst = arith.constant dense<0.000000e+00> : vector<16x256xf32>
    %7 = tpu.matmul %0, %1, %cst {dimension_numbers = #tpu.dot_dimension_numbers<[1], [0], [0], [1], [0, 0, 1, 1], [], []>} : vector<16x128xf32>, vector<128x256xf32>, vector<16x256xf32> -> vector<16x256xf32>
    %8 = vector.broadcast %3 : vector<1x256xf32> to vector<16x256xf32>
    %9 = arith.addf %7, %8 : vector<16x256xf32>
    %cst_13 = arith.constant 0.000000e+00 : f32
    %10 = vector.broadcast %cst_13 : f32 to vector<16x256xf32>
    %11 = arith.maximumf %9, %10 : vector<16x256xf32>
    %cst_14 = arith.constant dense<0.000000e+00> : vector<16x128xf32>
    %12 = tpu.matmul %11, %2, %cst_14 {dimension_numbers = #tpu.dot_dimension_numbers<[1], [0], [0], [1], [0, 0, 1, 1], [], []>} : vector<16x256xf32>, vector<256x128xf32>, vector<16x128xf32> -> vector<16x128xf32>
    %13 = vector.broadcast %4 : vector<1x128xf32> to vector<16x128xf32>
    %14 = arith.addf %12, %13 : vector<16x128xf32>
    %15 = arith.addf %0, %14 : vector<16x128xf32>
    %c1_i32 = arith.constant 1 : i32
    %cst_15 = arith.constant dense<0.000000e+00> : vector<16x256xf32>
    %16 = tpu.matmul %15, %1, %cst_15 {dimension_numbers = #tpu.dot_dimension_numbers<[1], [0], [0], [1], [0, 0, 1, 1], [], []>} : vector<16x128xf32>, vector<128x256xf32>, vector<16x256xf32> -> vector<16x256xf32>
    %17 = vector.broadcast %3 : vector<1x256xf32> to vector<16x256xf32>
    %18 = arith.addf %16, %17 : vector<16x256xf32>
    %cst_16 = arith.constant 0.000000e+00 : f32
    %19 = vector.broadcast %cst_16 : f32 to vector<16x256xf32>
    %20 = arith.maximumf %18, %19 : vector<16x256xf32>
    %cst_17 = arith.constant dense<0.000000e+00> : vector<16x128xf32>
    %21 = tpu.matmul %20, %2, %cst_17 {dimension_numbers = #tpu.dot_dimension_numbers<[1], [0], [0], [1], [0, 0, 1, 1], [], []>} : vector<16x256xf32>, vector<256x128xf32>, vector<16x128xf32> -> vector<16x128xf32>
    %22 = vector.broadcast %4 : vector<1x128xf32> to vector<16x128xf32>
    %23 = arith.addf %21, %22 : vector<16x128xf32>
    %24 = arith.addf %15, %23 : vector<16x128xf32>
    %c2_i32 = arith.constant 2 : i32
    %cst_18 = arith.constant dense<0.000000e+00> : vector<16x256xf32>
    %25 = tpu.matmul %24, %1, %cst_18 {dimension_numbers = #tpu.dot_dimension_numbers<[1], [0], [0], [1], [0, 0, 1, 1], [], []>} : vector<16x128xf32>, vector<128x256xf32>, vector<16x256xf32> -> vector<16x256xf32>
    %26 = vector.broadcast %3 : vector<1x256xf32> to vector<16x256xf32>
    %27 = arith.addf %25, %26 : vector<16x256xf32>
    %cst_19 = arith.constant 0.000000e+00 : f32
    %28 = vector.broadcast %cst_19 : f32 to vector<16x256xf32>
    %29 = arith.maximumf %27, %28 : vector<16x256xf32>
    %cst_20 = arith.constant dense<0.000000e+00> : vector<16x128xf32>
    %30 = tpu.matmul %29, %2, %cst_20 {dimension_numbers = #tpu.dot_dimension_numbers<[1], [0], [0], [1], [0, 0, 1, 1], [], []>} : vector<16x256xf32>, vector<256x128xf32>, vector<16x128xf32> -> vector<16x128xf32>
    %31 = vector.broadcast %4 : vector<1x128xf32> to vector<16x128xf32>
    %32 = arith.addf %30, %31 : vector<16x128xf32>
    %33 = arith.addf %24, %32 : vector<16x128xf32>
    %cst_21 = arith.constant dense<0.000000e+00> : vector<16xf32>
    %34 = vector.multi_reduction <add>, %33, %cst_21 [1] : vector<16x128xf32> to vector<16xf32>
    %35 = vector.shape_cast %34 : vector<16xf32> to vector<16x1xf32>
    %cst_22 = arith.constant 1.280000e+02 : f32
    %36 = vector.broadcast %cst_22 : f32 to vector<16x1xf32>
    %37 = arith.divf %35, %36 : vector<16x1xf32>
    %38 = vector.broadcast %37 : vector<16x1xf32> to vector<16x128xf32>
    %39 = arith.subf %33, %38 : vector<16x128xf32>
    %40 = arith.mulf %39, %39 : vector<16x128xf32>
    %cst_23 = arith.constant dense<0.000000e+00> : vector<16xf32>
    %41 = vector.multi_reduction <add>, %40, %cst_23 [1] : vector<16x128xf32> to vector<16xf32>
    %42 = vector.shape_cast %41 : vector<16xf32> to vector<16x1xf32>
    %cst_24 = arith.constant 1.270000e+02 : f32
    %43 = vector.broadcast %cst_24 : f32 to vector<16x1xf32>
    %44 = arith.divf %42, %43 : vector<16x1xf32>
    %45 = math.sqrt %44 : vector<16x1xf32>
    %cst_25 = arith.constant 9.99999997E-7 : f32
    %46 = vector.broadcast %cst_25 : f32 to vector<16x1xf32>
    %47 = arith.addf %45, %46 : vector<16x1xf32>
    %48 = tpu.reciprocal %47 {approx = true} : vector<16x1xf32> -> vector<16x1xf32>
    %49 = vector.broadcast %5 : vector<1x128xf32> to vector<16x128xf32>
    %50 = arith.mulf %49, %39 : vector<16x128xf32>
    %51 = vector.broadcast %48 : vector<16x1xf32> to vector<16x128xf32>
    %52 = arith.mulf %50, %51 : vector<16x128xf32>
    %53 = vector.broadcast %6 : vector<1x128xf32> to vector<16x128xf32>
    %54 = arith.addf %52, %53 : vector<16x128xf32>
    %c0_26 = arith.constant 0 : index
    %c0_27 = arith.constant 0 : index
    %55 = vector.load %arg8[%c0_26, %c0_27] : memref<16x128xf32, #tpu.memory_space<vmem>>, vector<16x128xf32>
    tpu.vector_store %arg8[%c0_26, %c0_27], %54 {strides = array<i32>} : memref<16x128xf32, #tpu.memory_space<vmem>>, vector<16x128xf32>,
    return
  }
  func.func @transform_0(%arg0: i32) -> (i32, i32) {
    %c0_i32 = arith.constant 0 : i32
    %c0_i32_0 = arith.constant 0 : i32
    return %arg0, %c0_i32 : i32, i32
  }
  func.func @transform_1(%arg0: i32) -> (i32, i32) {
    %c0_i32 = arith.constant 0 : i32
    %c0_i32_0 = arith.constant 0 : i32
    %c0_i32_1 = arith.constant 0 : i32
    return %c0_i32, %c0_i32_0 : i32, i32
  }
  func.func @transform_2(%arg0: i32) -> (i32, i32) {
    %c0_i32 = arith.constant 0 : i32
    %c0_i32_0 = arith.constant 0 : i32
    %c0_i32_1 = arith.constant 0 : i32
    return %c0_i32, %c0_i32_0 : i32, i32
  }
  func.func @transform_3(%arg0: i32) -> (i32, i32) {
    %c0_i32 = arith.constant 0 : i32
    %c0_i32_0 = arith.constant 0 : i32
    %c0_i32_1 = arith.constant 0 : i32
    return %c0_i32, %c0_i32_0 : i32, i32
  }
  func.func @transform_4(%arg0: i32) -> (i32, i32) {
    %c0_i32 = arith.constant 0 : i32
    %c0_i32_0 = arith.constant 0 : i32
    %c0_i32_1 = arith.constant 0 : i32
    return %c0_i32, %c0_i32_0 : i32, i32
  }
  func.func @transform_5(%arg0: i32) -> (i32, i32) {
    %c0_i32 = arith.constant 0 : i32
    %c0_i32_0 = arith.constant 0 : i32
    %c0_i32_1 = arith.constant 0 : i32
    return %c0_i32, %c0_i32_0 : i32, i32
  }
  func.func @transform_6(%arg0: i32) -> (i32, i32) {
    %c0_i32 = arith.constant 0 : i32
    %c0_i32_0 = arith.constant 0 : i32
    %c0_i32_1 = arith.constant 0 : i32
    return %c0_i32, %c0_i32_0 : i32, i32
  }
  func.func @transform_7(%arg0: i32) -> (i32, i32) {
    %c0_i32 = arith.constant 0 : i32
    %c0_i32_0 = arith.constant 0 : i32
    return %arg0, %c0_i32 : i32, i32
  }
}

</mosaic_0001>

<llo_original>
// kernel: tpu_custom_call.1
$region0: #{tpu_custom_call.1}
  #allocation0 [shape = 'u32[]', space=smem, size = 0x4, offset = 0x4, fixed_abs, tag = 'smem constant byte address 0x4 - core index']
  #allocation1 [shape = 'u32[144,128]{1,0:T(1,128)}', space=vmem, size = 0x12000, scoped, tag = 'internal scratch']
  %s0 = inlined_call_operand.hbm [shape: f32[16,128], index: 0, kind: input, shape index: {}]
  %s1 = inlined_call_operand.hbm [shape: f32[128,256], index: 1, kind: input, shape index: {}]
  %s2 = inlined_call_operand.vmem [shape: f32[1,256], index: 2, kind: input, shape index: {}]
  %s3 = inlined_call_operand.hbm [shape: f32[256,128], index: 3, kind: input, shape index: {}]
  %s4 = inlined_call_operand.vmem [shape: f32[1,128], index: 4, kind: input, shape index: {}]
  %s5 = inlined_call_operand.vmem [shape: f32[1,128], index: 5, kind: input, shape index: {}]
  %s6 = inlined_call_operand.vmem [shape: f32[1,128], index: 6, kind: input, shape index: {}]
  %s7 = inlined_call_operand.hbm [shape: f32[16,128], index: 7, kind: output, shape index: {}]
  %s8 = sld [smem:[#allocation0]]
  $region50: #{tpu_custom_call.1} parent=0
    _
  %s10 = ssub.s32 1, %s8
  %s11 = scalar_select 0, %s10, %s8
  $region1: #{tpu_custom_call.1} parent=0
    #allocation2 [shape = 'u8[8192]{0}', space=vmem, size = 0x2000, scoped, tag = 'input window, operand 0, single buffered']
    #allocation3 [shape = 's32[1]{0}', space=sflag, size = 0x4, scoped, tag = 'scoped memory for tpu_custom_call.1']
    #allocation4 [shape = 's32[1]{0}', space=sflag, size = 0x4, scoped, tag = 'scoped memory for tpu_custom_call.1']
    #allocation5 [shape = 'u8[131072]{0}', space=vmem, size = 0x20000, scoped, tag = 'input window, operand 1, single buffered']
    #allocation6 [shape = 's32[1]{0}', space=sflag, size = 0x4, scoped, tag = 'scoped memory for tpu_custom_call.1']
    #allocation7 [shape = 'u8[131072]{0}', space=vmem, size = 0x20000, scoped, tag = 'input window, operand 3, single buffered']
    #allocation8 [shape = 'u8[8192]{0}', space=vmem, size = 0x2000, scoped, tag = 'output window, operand 0, single buffered']
    %12 = vsyncpa [#allocation3], 0
    %13 = vsyncpa [#allocation6], 0
    %14 = vsyncpa [#allocation4], 0
    // Predicated region
    $region2: #{tpu_custom_call.1} parent=1 // pred_check
      _
    $region3: #{tpu_custom_call.1} parent=1 // pred_check_branch
      %16 = sbr.rel (0) target = $region5
    $region4: #{tpu_custom_call.1} parent=1 // pred_region
      %s18 = ssub.s32 256, 256
      %19 = vsyncadd [#allocation3], %s18
      %s20 = sshll.u32 [#allocation2], 4
      %s21 = int_to_ptr.vmem [resolvable:$true] %s20
      %26 = dma.hbm_to_vmem [thread:$0]  %s0, 256, %s21, [#allocation3], 128, 128, 8
    $region5: #{tpu_custom_call.1} parent=1 // pred_fallthru
      _
    // Predicated region
    $region6: #{tpu_custom_call.1} parent=1 // pred_check
      _
    $region7: #{tpu_custom_call.1} parent=1 // pred_check_branch
      %28 = sbr.rel (0) target = $region9
    $region8: #{tpu_custom_call.1} parent=1 // pred_region
      %s30 = ssub.s32 4096, 4096
      %31 = vsyncadd [#allocation6], %s30
      %s32 = sshll.u32 [#allocation5], 4
      %s33 = int_to_ptr.vmem [resolvable:$true] %s32
      %38 = dma.hbm_to_vmem [thread:$0]  %s1, 4096, %s33, [#allocation6], 256, 256, 16
    $region9: #{tpu_custom_call.1} parent=1 // pred_fallthru
      _
    // Predicated region
    $region10: #{tpu_custom_call.1} parent=1 // pred_check
      _
    $region11: #{tpu_custom_call.1} parent=1 // pred_check_branch
      %40 = sbr.rel (0) target = $region13
    $region12: #{tpu_custom_call.1} parent=1 // pred_region
      _
    $region13: #{tpu_custom_call.1} parent=1 // pred_fallthru
      _
    // Predicated region
    $region14: #{tpu_custom_call.1} parent=1 // pred_check
      _
    $region15: #{tpu_custom_call.1} parent=1 // pred_check_branch
      %42 = sbr.rel (0) target = $region17
    $region16: #{tpu_custom_call.1} parent=1 // pred_region
      %s44 = ssub.s32 4096, 4096
      %45 = vsyncadd [#allocation6], %s44
      %s46 = sshll.u32 [#allocation7], 4
      %s47 = int_to_ptr.vmem [resolvable:$true] %s46
      %52 = dma.hbm_to_vmem [thread:$0]  %s3, 4096, %s47, [#allocation6], 128, 128, 8
    $region17: #{tpu_custom_call.1} parent=1 // pred_fallthru
      _
    // Predicated region
    $region18: #{tpu_custom_call.1} parent=1 // pred_check
      _
    $region19: #{tpu_custom_call.1} parent=1 // pred_check_branch
      %54 = sbr.rel (0) target = $region21
    $region20: #{tpu_custom_call.1} parent=1 // pred_region
      _
    $region21: #{tpu_custom_call.1} parent=1 // pred_fallthru
      _
    // Predicated region
    $region22: #{tpu_custom_call.1} parent=1 // pred_check
      _
    $region23: #{tpu_custom_call.1} parent=1 // pred_check_branch
      %56 = sbr.rel (0) target = $region25
    $region24: #{tpu_custom_call.1} parent=1 // pred_region
      _
    $region25: #{tpu_custom_call.1} parent=1 // pred_fallthru
      _
    // Predicated region
    $region26: #{tpu_custom_call.1} parent=1 // pred_check
      _
    $region27: #{tpu_custom_call.1} parent=1 // pred_check_branch
      %58 = sbr.rel (0) target = $region29
    $region28: #{tpu_custom_call.1} parent=1 // pred_region
      _
    $region29: #{tpu_custom_call.1} parent=1 // pred_fallthru
      _
    // Predicated region
    $region30: #{tpu_custom_call.1} parent=1 // pred_check
      _
    $region31: #{tpu_custom_call.1} parent=1 // pred_check_branch
      %60 = sbr.rel (0) target = $region33
    $region32: #{tpu_custom_call.1} parent=1 // pred_region
      %61 = dma.done [#allocation3], 256
    $region33: #{tpu_custom_call.1} parent=1 // pred_fallthru
      _
    // Predicated region
    $region34: #{tpu_custom_call.1} parent=1 // pred_check
      _
    $region35: #{tpu_custom_call.1} parent=1 // pred_check_branch
      %63 = sbr.rel (0) target = $region37
    $region36: #{tpu_custom_call.1} parent=1 // pred_region
      %64 = dma.done [#allocation6], 4096
    $region37: #{tpu_custom_call.1} parent=1 // pred_fallthru
      _
    // Predicated region
    $region38: #{tpu_custom_call.1} parent=1 // pred_check
      _
    $region39: #{tpu_custom_call.1} parent=1 // pred_check_branch
      %66 = sbr.rel (0) target = $region41
    $region40: #{tpu_custom_call.1} parent=1 // pred_region
      %67 = dma.done [#allocation6], 4096
    $region41: #{tpu_custom_call.1} parent=1 // pred_fallthru
      _
    %v68 = vld [vmem:[#allocation2] sm:$0xff]
    %v69 = vld [vmem:[#allocation2 + $0x8] sm:$0xff]
    %v70 = vld [vmem:[#allocation5] sm:$0xff]
    %v71 = vld [vmem:[#allocation5 + $0x8] sm:$0xff]
    %v72 = vld [vmem:[#allocation5 + $0x10] sm:$0xff]
    %v73 = vld [vmem:[#allocation5 + $0x18] sm:$0xff]
    %v74 = vld [vmem:[#allocation5 + $0x20] sm:$0xff]
    %v75 = vld [vmem:[#allocation5 + $0x28] sm:$0xff]
    %v76 = vld [vmem:[#allocation5 + $0x30] sm:$0xff]
    %v77 = vld [vmem:[#allocation5 + $0x38] sm:$0xff]
    %v78 = vld [vmem:[#allocation5 + $0x40] sm:$0xff]
    %v79 = vld [vmem:[#allocation5 + $0x48] sm:$0xff]
    %v80 = vld [vmem:[#allocation5 + $0x50] sm:$0xff]
    %v81 = vld [vmem:[#allocation5 + $0x58] sm:$0xff]
    %v82 = vld [vmem:[#allocation5 + $0x60] sm:$0xff]
    %v83 = vld [vmem:[#allocation5 + $0x68] sm:$0xff]
    %v84 = vld [vmem:[#allocation5 + $0x70] sm:$0xff]
    %v85 = vld [vmem:[#allocation5 + $0x78] sm:$0xff]
    %v86 = vld [vmem:[#allocation5 + $0x80] sm:$0xff]
    %v87 = vld [vmem:[#allocation5 + $0x88] sm:$0xff]
    %v88 = vld [vmem:[#allocation5 + $0x90] sm:$0xff]
    %v89 = vld [vmem:[#allocation5 + $0x98] sm:$0xff]
    %v90 = vld [vmem:[#allocation5 + $0xa0] sm:$0xff]
    %v91 = vld [vmem:[#allocation5 + $0xa8] sm:$0xff]
    %v92 = vld [vmem:[#allocation5 + $0xb0] sm:$0xff]
    %v93 = vld [vmem:[#allocation5 + $0xb8] sm:$0xff]
    %v94 = vld [vmem:[#allocation5 + $0xc0] sm:$0xff]
    %v95 = vld [vmem:[#allocation5 + $0xc8] sm:$0xff]
    %v96 = vld [vmem:[#allocation5 + $0xd0] sm:$0xff]
    %v97 = vld [vmem:[#allocation5 + $0xd8] sm:$0xff]
    %v98 = vld [vmem:[#allocation5 + $0xe0] sm:$0xff]
    %v99 = vld [vmem:[#allocation5 + $0xe8] sm:$0xff]
    %v100 = vld [vmem:[#allocation5 + $0xf0] sm:$0xff]
    %v101 = vld [vmem:[#allocation5 + $0xf8] sm:$0xff]
    %v102 = vld [vmem:[#allocation7] sm:$0xff]
    %v103 = vld [vmem:[#allocation7 + $0x8] sm:$0xff]
    %v104 = vld [vmem:[#allocation7 + $0x10] sm:$0xff]
    %v105 = vld [vmem:[#allocation7 + $0x18] sm:$0xff]
    %v106 = vld [vmem:[#allocation7 + $0x20] sm:$0xff]
    %v107 = vld [vmem:[#allocation7 + $0x28] sm:$0xff]
    %v108 = vld [vmem:[#allocation7 + $0x30] sm:$0xff]
    %v109 = vld [vmem:[#allocation7 + $0x38] sm:$0xff]
    %v110 = vld [vmem:[#allocation7 + $0x40] sm:$0xff]
    %v111 = vld [vmem:[#allocation7 + $0x48] sm:$0xff]
    %v112 = vld [vmem:[#allocation7 + $0x50] sm:$0xff]
    %v113 = vld [vmem:[#allocation7 + $0x58] sm:$0xff]
    %v114 = vld [vmem:[#allocation7 + $0x60] sm:$0xff]
    %v115 = vld [vmem:[#allocation7 + $0x68] sm:$0xff]
    %v116 = vld [vmem:[#allocation7 + $0x70] sm:$0xff]
    %v117 = vld [vmem:[#allocation7 + $0x78] sm:$0xff]
    %v118 = vld [vmem:[#allocation7 + $0x80] sm:$0xff]
    %v119 = vld [vmem:[#allocation7 + $0x88] sm:$0xff]
    %v120 = vld [vmem:[#allocation7 + $0x90] sm:$0xff]
    %v121 = vld [vmem:[#allocation7 + $0x98] sm:$0xff]
    %v122 = vld [vmem:[#allocation7 + $0xa0] sm:$0xff]
    %v123 = vld [vmem:[#allocation7 + $0xa8] sm:$0xff]
    %v124 = vld [vmem:[#allocation7 + $0xb0] sm:$0xff]
    %v125 = vld [vmem:[#allocation7 + $0xb8] sm:$0xff]
    %v126 = vld [vmem:[#allocation7 + $0xc0] sm:$0xff]
    %v127 = vld [vmem:[#allocation7 + $0xc8] sm:$0xff]
    %v128 = vld [vmem:[#allocation7 + $0xd0] sm:$0xff]
    %v129 = vld [vmem:[#allocation7 + $0xd8] sm:$0xff]
    %v130 = vld [vmem:[#allocation7 + $0xe0] sm:$0xff]
    %v131 = vld [vmem:[#allocation7 + $0xe8] sm:$0xff]
    %v132 = vld [vmem:[#allocation7 + $0xf0] sm:$0xff]
    %v133 = vld [vmem:[#allocation7 + $0xf8] sm:$0xff]
    %v134 = vld [vmem:[%s2] sm:$0x3]
    %v135 = vld [vmem:[%s4] sm:$0x1]
    %v136 = vld [vmem:[%s5] sm:$0x1]
    %v137 = vld [vmem:[%s6] sm:$0x1]
    %v139 = vlaneseq
    %v140 = vshrl.u32 %v139, 7
    %v141 = vsub.s32 0, %v140
    %v142 = vrot.slane %v134, %v141
    %v143 = vlaneseq
    %v144 = vshrl.u32 %v143, 7
    %v145 = vsub.s32 1, %v144
    %v146 = vrot.slane %v134, %v145
    %149 = vmatprep.subr.mxu0 %v71
    %150 = vmatpush1.msra.mxu0 %v70
    %151 = vmatprep.subr.mxu0 %v73
    %152 = vmatpush1.msra.mxu0 %v72
    %153 = vmatprep.subr.mxu0 %v75
    %154 = vmatpush1.msra.mxu0 %v74
    %155 = vmatprep.subr.mxu0 %v77
    %156 = vmatpush1.msra.mxu0 %v76
    %157 = vmatprep.subr.mxu0 %v79
    %158 = vmatpush1.msra.mxu0 %v78
    %159 = vmatprep.subr.mxu0 %v81
    %160 = vmatpush1.msra.mxu0 %v80
    %161 = vmatprep.subr.mxu0 %v83
    %162 = vmatpush1.msra.mxu0 %v82
    %163 = vmatprep.subr.mxu0 %v85
    %164 = vmatpush1.msra.mxu0 %v84
    %165 = vmatprep.subr.mxu0 %v87
    %166 = vmatpush1.msra.mxu0 %v86
    %167 = vmatprep.subr.mxu0 %v89
    %168 = vmatpush1.msra.mxu0 %v88
    %169 = vmatprep.subr.mxu0 %v91
    %170 = vmatpush1.msra.mxu0 %v90
    %171 = vmatprep.subr.mxu0 %v93
    %172 = vmatpush1.msra.mxu0 %v92
    %173 = vmatprep.subr.mxu0 %v95
    %174 = vmatpush1.msra.mxu0 %v94
    %175 = vmatprep.subr.mxu0 %v97
    %176 = vmatpush1.msra.mxu0 %v96
    %177 = vmatprep.subr.mxu0 %v99
    %178 = vmatpush1.msra.mxu0 %v98
    %179 = vmatprep.subr.mxu0 %v101
    %180 = vmatpush1.msra.mxu0 %v100
    %181 = vmatprep.subr.mxu0 0.0
    %182 = vmatpush1.msra.mxu0 0.0
    %183 = vmatprep.subr.mxu0 0.0
    %184 = vmatpush1.msra.mxu0 0.0
    %185 = vmatprep.subr.mxu0 0.0
    %186 = vmatpush1.msra.mxu0 0.0
    %187 = vmatprep.subr.mxu0 0.0
    %188 = vmatpush1.msra.mxu0 0.0
    %189 = vmatprep.subr.mxu0 0.0
    %190 = vmatpush1.msra.mxu0 0.0
    %191 = vmatprep.subr.mxu0 0.0
    %192 = vmatpush1.msra.mxu0 0.0
    %193 = vmatprep.subr.mxu0 0.0
    %194 = vmatpush1.msra.mxu0 0.0
    %195 = vmatprep.subr.mxu0 0.0
    %196 = vmatpush1.msra.mxu0 0.0
    %197 = vmatprep.subr.mxu0 0.0
    %198 = vmatpush1.msra.mxu0 0.0
    %199 = vmatprep.subr.mxu0 0.0
    %200 = vmatpush1.msra.mxu0 0.0
    %201 = vmatprep.subr.mxu0 0.0
    %202 = vmatpush1.msra.mxu0 0.0
    %203 = vmatprep.subr.mxu0 0.0
    %204 = vmatpush1.msra.mxu0 0.0
    %205 = vmatprep.subr.mxu0 0.0
    %206 = vmatpush1.msra.mxu0 0.0
    %207 = vmatprep.subr.mxu0 0.0
    %208 = vmatpush1.msra.mxu0 0.0
    %209 = vmatprep.subr.mxu0 0.0
    %210 = vmatpush1.msra.mxu0 0.0
    %211 = vmatprep.subr.mxu0 0.0
    %212 = vmatpush1.msra.mxu0 0.0
    %213 = vmatprep.mubr.f32.mxu0 0.0
    %214 = vmatmul.mubr.f32.gmra.mrb[0].mxu0 %v68
    %v215 = vpop.f32.mrb[0].mxu0
    %v216 = vadd.f32 %v142, %v215
    %v217 = vpop.f32.mrb[0].mxu0
    %v218 = vadd.f32 %v146, %v217
    %219 = vmatprep.mubr.f32.mxu0 0.0
    %220 = vmatmul.mubr.f32.gmra.mrb[0].mxu0 %v69
    %v221 = vpop.f32.mrb[0].mxu0
    %v222 = vadd.f32 %v142, %v221
    %v223 = vpop.f32.mrb[0].mxu0
    %v224 = vadd.f32 %v146, %v223
    %225 = vdwg.mxu0
    %v226 = vmax.f32 %v216, 0.0
    %v227 = vmax.f32 %v218, 0.0
    %v228 = vmax.f32 %v222, 0.0
    %v229 = vmax.f32 %v224, 0.0
    %v231 = vlaneseq
    %v232 = vshrl.u32 %v231, 7
    %v233 = vsub.s32 0, %v232
    %v234 = vrot.slane %v135, %v233
    %236 = vmatprep.subr.mxu0 0.0
    %237 = vmatpush1.msra.mxu0 %v102
    %238 = vmatprep.subr.mxu0 0.0
    %239 = vmatpush1.msra.mxu0 %v103
    %240 = vmatprep.subr.mxu0 0.0
    %241 = vmatpush1.msra.mxu0 %v104
    %242 = vmatprep.subr.mxu0 0.0
    %243 = vmatpush1.msra.mxu0 %v105
    %244 = vmatprep.subr.mxu0 0.0
    %245 = vmatpush1.msra.mxu0 %v106
    %246 = vmatprep.subr.mxu0 0.0
    %247 = vmatpush1.msra.mxu0 %v107
    %248 = vmatprep.subr.mxu0 0.0
    %249 = vmatpush1.msra.mxu0 %v108
    %250 = vmatprep.subr.mxu0 0.0
    %251 = vmatpush1.msra.mxu0 %v109
    %252 = vmatprep.subr.mxu0 0.0
    %253 = vmatpush1.msra.mxu0 %v110
    %254 = vmatprep.subr.mxu0 0.0
    %255 = vmatpush1.msra.mxu0 %v111
    %256 = vmatprep.subr.mxu0 0.0
    %257 = vmatpush1.msra.mxu0 %v112
    %258 = vmatprep.subr.mxu0 0.0
    %259 = vmatpush1.msra.mxu0 %v113
    %260 = vmatprep.subr.mxu0 0.0
    %261 = vmatpush1.msra.mxu0 %v114
    %262 = vmatprep.subr.mxu0 0.0
    %263 = vmatpush1.msra.mxu0 %v115
    %264 = vmatprep.subr.mxu0 0.0
    %265 = vmatpush1.msra.mxu0 %v116
    %266 = vmatprep.subr.mxu0 0.0
    %267 = vmatpush1.msra.mxu0 %v117
    %268 = vmatprep.subr.mxu0 0.0
    %269 = vmatpush1.msra.mxu0 %v118
    %270 = vmatprep.subr.mxu0 0.0
    %271 = vmatpush1.msra.mxu0 %v119
    %272 = vmatprep.subr.mxu0 0.0
    %273 = vmatpush1.msra.mxu0 %v120
    %274 = vmatprep.subr.mxu0 0.0
    %275 = vmatpush1.msra.mxu0 %v121
    %276 = vmatprep.subr.mxu0 0.0
    %277 = vmatpush1.msra.mxu0 %v122
    %278 = vmatprep.subr.mxu0 0.0
    %279 = vmatpush1.msra.mxu0 %v123
    %280 = vmatprep.subr.mxu0 0.0
    %281 = vmatpush1.msra.mxu0 %v124
    %282 = vmatprep.subr.mxu0 0.0
    %283 = vmatpush1.msra.mxu0 %v125
    %284 = vmatprep.subr.mxu0 0.0
    %285 = vmatpush1.msra.mxu0 %v126
    %286 = vmatprep.subr.mxu0 0.0
    %287 = vmatpush1.msra.mxu0 %v127
    %288 = vmatprep.subr.mxu0 0.0
    %289 = vmatpush1.msra.mxu0 %v128
    %290 = vmatprep.subr.mxu0 0.0
    %291 = vmatpush1.msra.mxu0 %v129
    %292 = vmatprep.subr.mxu0 0.0
    %293 = vmatpush1.msra.mxu0 %v130
    %294 = vmatprep.subr.mxu0 0.0
    %295 = vmatpush1.msra.mxu0 %v131
    %296 = vmatprep.subr.mxu0 0.0
    %297 = vmatpush1.msra.mxu0 %v132
    %298 = vmatprep.subr.mxu0 0.0
    %299 = vmatpush1.msra.mxu0 %v133
    %300 = vmatprep.mubr.f32.mxu0 %v227
    %301 = vmatmul.mubr.f32.gmra.mrb[0].mxu0 %v226
    %v302 = vpop.f32.mrb[0].mxu0
    %v303 = vadd.f32 %v234, %v302
    %v304 = vpop.f32.mrb[0].mxu0
    %305 = vmatprep.mubr.f32.mxu0 %v229
    %306 = vmatmul.mubr.f32.gmra.mrb[0].mxu0 %v228
    %v307 = vpop.f32.mrb[0].mxu0
    %v308 = vadd.f32 %v234, %v307
    %v309 = vpop.f32.mrb[0].mxu0
    %310 = vdwg.mxu0
    %v311 = vadd.f32 %v68, %v303
    %v312 = vadd.f32 %v69, %v308
    %313 = vmatprep.subr.mxu0 %v71
    %314 = vmatpush1.msra.mxu0 %v70
    %315 = vmatprep.subr.mxu0 %v73
    %316 = vmatpush1.msra.mxu0 %v72
    %317 = vmatprep.subr.mxu0 %v75
    %318 = vmatpush1.msra.mxu0 %v74
    %319 = vmatprep.subr.mxu0 %v77
    %320 = vmatpush1.msra.mxu0 %v76
    %321 = vmatprep.subr.mxu0 %v79
    %322 = vmatpush1.msra.mxu0 %v78
    %323 = vmatprep.subr.mxu0 %v81
    %324 = vmatpush1.msra.mxu0 %v80
    %325 = vmatprep.subr.mxu0 %v83
    %326 = vmatpush1.msra.mxu0 %v82
    %327 = vmatprep.subr.mxu0 %v85
    %328 = vmatpush1.msra.mxu0 %v84
    %329 = vmatprep.subr.mxu0 %v87
    %330 = vmatpush1.msra.mxu0 %v86
    %331 = vmatprep.subr.mxu0 %v89
    %332 = vmatpush1.msra.mxu0 %v88
    %333 = vmatprep.subr.mxu0 %v91
    %334 = vmatpush1.msra.mxu0 %v90
    %335 = vmatprep.subr.mxu0 %v93
    %336 = vmatpush1.msra.mxu0 %v92
    %337 = vmatprep.subr.mxu0 %v95
    %338 = vmatpush1.msra.mxu0 %v94
    %339 = vmatprep.subr.mxu0 %v97
    %340 = vmatpush1.msra.mxu0 %v96
    %341 = vmatprep.subr.mxu0 %v99
    %342 = vmatpush1.msra.mxu0 %v98
    %343 = vmatprep.subr.mxu0 %v101
    %344 = vmatpush1.msra.mxu0 %v100
    %345 = vmatprep.subr.mxu0 0.0
    %346 = vmatpush1.msra.mxu0 0.0
    %347 = vmatprep.subr.mxu0 0.0
    %348 = vmatpush1.msra.mxu0 0.0
    %349 = vmatprep.subr.mxu0 0.0
    %350 = vmatpush1.msra.mxu0 0.0
    %351 = vmatprep.subr.mxu0 0.0
    %352 = vmatpush1.msra.mxu0 0.0
    %353 = vmatprep.subr.mxu0 0.0
    %354 = vmatpush1.msra.mxu0 0.0
    %355 = vmatprep.subr.mxu0 0.0
    %356 = vmatpush1.msra.mxu0 0.0
    %357 = vmatprep.subr.mxu0 0.0
    %358 = vmatpush1.msra.mxu0 0.0
    %359 = vmatprep.subr.mxu0 0.0
    %360 = vmatpush1.msra.mxu0 0.0
    %361 = vmatprep.subr.mxu0 0.0
    %362 = vmatpush1.msra.mxu0 0.0
    %363 = vmatprep.subr.mxu0 0.0
    %364 = vmatpush1.msra.mxu0 0.0
    %365 = vmatprep.subr.mxu0 0.0
    %366 = vmatpush1.msra.mxu0 0.0
    %367 = vmatprep.subr.mxu0 0.0
    %368 = vmatpush1.msra.mxu0 0.0
    %369 = vmatprep.subr.mxu0 0.0
    %370 = vmatpush1.msra.mxu0 0.0
    %371 = vmatprep.subr.mxu0 0.0
    %372 = vmatpush1.msra.mxu0 0.0
    %373 = vmatprep.subr.mxu0 0.0
    %374 = vmatpush1.msra.mxu0 0.0
    %375 = vmatprep.subr.mxu0 0.0
    %376 = vmatpush1.msra.mxu0 0.0
    %377 = vmatprep.mubr.f32.mxu0 0.0
    %378 = vmatmul.mubr.f32.gmra.mrb[0].mxu0 %v311
    %v379 = vpop.f32.mrb[0].mxu0
    %v380 = vadd.f32 %v142, %v379
    %v381 = vpop.f32.mrb[0].mxu0
    %v382 = vadd.f32 %v146, %v381
    %383 = vmatprep.mubr.f32.mxu0 0.0
    %384 = vmatmul.mubr.f32.gmra.mrb[0].mxu0 %v312
    %v385 = vpop.f32.mrb[0].mxu0
    %v386 = vadd.f32 %v142, %v385
    %v387 = vpop.f32.mrb[0].mxu0
    %v388 = vadd.f32 %v146, %v387
    %389 = vdwg.mxu0
    %v390 = vmax.f32 %v380, 0.0
    %v391 = vmax.f32 %v382, 0.0
    %v392 = vmax.f32 %v386, 0.0
    %v393 = vmax.f32 %v388, 0.0
    %394 = vmatprep.subr.mxu0 0.0
    %395 = vmatpush1.msra.mxu0 %v102
    %396 = vmatprep.subr.mxu0 0.0
    %397 = vmatpush1.msra.mxu0 %v103
    %398 = vmatprep.subr.mxu0 0.0
    %399 = vmatpush1.msra.mxu0 %v104
    %400 = vmatprep.subr.mxu0 0.0
    %401 = vmatpush1.msra.mxu0 %v105
    %402 = vmatprep.subr.mxu0 0.0
    %403 = vmatpush1.msra.mxu0 %v106
    %404 = vmatprep.subr.mxu0 0.0
    %405 = vmatpush1.msra.mxu0 %v107
    %406 = vmatprep.subr.mxu0 0.0
    %407 = vmatpush1.msra.mxu0 %v108
    %408 = vmatprep.subr.mxu0 0.0
    %409 = vmatpush1.msra.mxu0 %v109
    %410 = vmatprep.subr.mxu0 0.0
    %411 = vmatpush1.msra.mxu0 %v110
    %412 = vmatprep.subr.mxu0 0.0
    %413 = vmatpush1.msra.mxu0 %v111
    %414 = vmatprep.subr.mxu0 0.0
    %415 = vmatpush1.msra.mxu0 %v112
    %416 = vmatprep.subr.mxu0 0.0
    %417 = vmatpush1.msra.mxu0 %v113
    %418 = vmatprep.subr.mxu0 0.0
    %419 = vmatpush1.msra.mxu0 %v114
    %420 = vmatprep.subr.mxu0 0.0
    %421 = vmatpush1.msra.mxu0 %v115
    %422 = vmatprep.subr.mxu0 0.0
    %423 = vmatpush1.msra.mxu0 %v116
    %424 = vmatprep.subr.mxu0 0.0
    %425 = vmatpush1.msra.mxu0 %v117
    %426 = vmatprep.subr.mxu0 0.0
    %427 = vmatpush1.msra.mxu0 %v118
    %428 = vmatprep.subr.mxu0 0.0
    %429 = vmatpush1.msra.mxu0 %v119
    %430 = vmatprep.subr.mxu0 0.0
    %431 = vmatpush1.msra.mxu0 %v120
    %432 = vmatprep.subr.mxu0 0.0
    %433 = vmatpush1.msra.mxu0 %v121
    %434 = vmatprep.subr.mxu0 0.0
    %435 = vmatpush1.msra.mxu0 %v122
    %436 = vmatprep.subr.mxu0 0.0
    %437 = vmatpush1.msra.mxu0 %v123
    %438 = vmatprep.subr.mxu0 0.0
    %439 = vmatpush1.msra.mxu0 %v124
    %440 = vmatprep.subr.mxu0 0.0
    %441 = vmatpush1.msra.mxu0 %v125
    %442 = vmatprep.subr.mxu0 0.0
    %443 = vmatpush1.msra.mxu0 %v126
    %444 = vmatprep.subr.mxu0 0.0
    %445 = vmatpush1.msra.mxu0 %v127
    %446 = vmatprep.subr.mxu0 0.0
    %447 = vmatpush1.msra.mxu0 %v128
    %448 = vmatprep.subr.mxu0 0.0
    %449 = vmatpush1.msra.mxu0 %v129
    %450 = vmatprep.subr.mxu0 0.0
    %451 = vmatpush1.msra.mxu0 %v130
    %452 = vmatprep.subr.mxu0 0.0
    %453 = vmatpush1.msra.mxu0 %v131
    %454 = vmatprep.subr.mxu0 0.0
    %455 = vmatpush1.msra.mxu0 %v132
    %456 = vmatprep.subr.mxu0 0.0
    %457 = vmatpush1.msra.mxu0 %v133
    %458 = vmatprep.mubr.f32.mxu0 %v391
    %459 = vmatmul.mubr.f32.gmra.mrb[0].mxu0 %v390
    %v460 = vpop.f32.mrb[0].mxu0
    %v461 = vadd.f32 %v234, %v460
    %v462 = vpop.f32.mrb[0].mxu0
    %463 = vmatprep.mubr.f32.mxu0 %v393
    %464 = vmatmul.mubr.f32.gmra.mrb[0].mxu0 %v392
    %v465 = vpop.f32.mrb[0].mxu0
    %v466 = vadd.f32 %v234, %v465
    %v467 = vpop.f32.mrb[0].mxu0
    %468 = vdwg.mxu0
    %v469 = vadd.f32 %v311, %v461
    %v470 = vadd.f32 %v312, %v466
    %471 = vmatprep.subr.mxu0 %v71
    %472 = vmatpush1.msra.mxu0 %v70
    %473 = vmatprep.subr.mxu0 %v73
    %474 = vmatpush1.msra.mxu0 %v72
    %475 = vmatprep.subr.mxu0 %v75
    %476 = vmatpush1.msra.mxu0 %v74
    %477 = vmatprep.subr.mxu0 %v77
    %478 = vmatpush1.msra.mxu0 %v76
    %479 = vmatprep.subr.mxu0 %v79
    %480 = vmatpush1.msra.mxu0 %v78
    %481 = vmatprep.subr.mxu0 %v81
    %482 = vmatpush1.msra.mxu0 %v80
    %483 = vmatprep.subr.mxu0 %v83
    %484 = vmatpush1.msra.mxu0 %v82
    %485 = vmatprep.subr.mxu0 %v85
    %486 = vmatpush1.msra.mxu0 %v84
    %487 = vmatprep.subr.mxu0 %v87
    %488 = vmatpush1.msra.mxu0 %v86
    %489 = vmatprep.subr.mxu0 %v89
    %490 = vmatpush1.msra.mxu0 %v88
    %491 = vmatprep.subr.mxu0 %v91
    %492 = vmatpush1.msra.mxu0 %v90
    %493 = vmatprep.subr.mxu0 %v93
    %494 = vmatpush1.msra.mxu0 %v92
    %495 = vmatprep.subr.mxu0 %v95
    %496 = vmatpush1.msra.mxu0 %v94
    %497 = vmatprep.subr.mxu0 %v97
    %498 = vmatpush1.msra.mxu0 %v96
    %499 = vmatprep.subr.mxu0 %v99
    %500 = vmatpush1.msra.mxu0 %v98
    %501 = vmatprep.subr.mxu0 %v101
    %502 = vmatpush1.msra.mxu0 %v100
    %503 = vmatprep.subr.mxu0 0.0
    %504 = vmatpush1.msra.mxu0 0.0
    %505 = vmatprep.subr.mxu0 0.0
    %506 = vmatpush1.msra.mxu0 0.0
    %507 = vmatprep.subr.mxu0 0.0
    %508 = vmatpush1.msra.mxu0 0.0
    %509 = vmatprep.subr.mxu0 0.0
    %510 = vmatpush1.msra.mxu0 0.0
    %511 = vmatprep.subr.mxu0 0.0
    %512 = vmatpush1.msra.mxu0 0.0
    %513 = vmatprep.subr.mxu0 0.0
    %514 = vmatpush1.msra.mxu0 0.0
    %515 = vmatprep.subr.mxu0 0.0
    %516 = vmatpush1.msra.mxu0 0.0
    %517 = vmatprep.subr.mxu0 0.0
    %518 = vmatpush1.msra.mxu0 0.0
    %519 = vmatprep.subr.mxu0 0.0
    %520 = vmatpush1.msra.mxu0 0.0
    %521 = vmatprep.subr.mxu0 0.0
    %522 = vmatpush1.msra.mxu0 0.0
    %523 = vmatprep.subr.mxu0 0.0
    %524 = vmatpush1.msra.mxu0 0.0
    %525 = vmatprep.subr.mxu0 0.0
    %526 = vmatpush1.msra.mxu0 0.0
    %527 = vmatprep.subr.mxu0 0.0
    %528 = vmatpush1.msra.mxu0 0.0
    %529 = vmatprep.subr.mxu0 0.0
    %530 = vmatpush1.msra.mxu0 0.0
    %531 = vmatprep.subr.mxu0 0.0
    %532 = vmatpush1.msra.mxu0 0.0
    %533 = vmatprep.subr.mxu0 0.0
    %534 = vmatpush1.msra.mxu0 0.0
    %535 = vmatprep.mubr.f32.mxu0 0.0
    %536 = vmatmul.mubr.f32.gmra.mrb[0].mxu0 %v469
    %v537 = vpop.f32.mrb[0].mxu0
    %v538 = vadd.f32 %v142, %v537
    %v539 = vpop.f32.mrb[0].mxu0
    %v540 = vadd.f32 %v146, %v539
    %541 = vmatprep.mubr.f32.mxu0 0.0
    %542 = vmatmul.mubr.f32.gmra.mrb[0].mxu0 %v470
    %v543 = vpop.f32.mrb[0].mxu0
    %v544 = vadd.f32 %v142, %v543
    %v545 = vpop.f32.mrb[0].mxu0
    %v546 = vadd.f32 %v146, %v545
    %547 = vdwg.mxu0
    %v548 = vmax.f32 %v538, 0.0
    %v549 = vmax.f32 %v540, 0.0
    %v550 = vmax.f32 %v544, 0.0
    %v551 = vmax.f32 %v546, 0.0
    %552 = vmatprep.subr.mxu0 0.0
    %553 = vmatpush1.msra.mxu0 %v102
    %554 = vmatprep.subr.mxu0 0.0
    %555 = vmatpush1.msra.mxu0 %v103
    %556 = vmatprep.subr.mxu0 0.0
    %557 = vmatpush1.msra.mxu0 %v104
    %558 = vmatprep.subr.mxu0 0.0
    %559 = vmatpush1.msra.mxu0 %v105
    %560 = vmatprep.subr.mxu0 0.0
    %561 = vmatpush1.msra.mxu0 %v106
    %562 = vmatprep.subr.mxu0 0.0
    %563 = vmatpush1.msra.mxu0 %v107
    %564 = vmatprep.subr.mxu0 0.0
    %565 = vmatpush1.msra.mxu0 %v108
    %566 = vmatprep.subr.mxu0 0.0
    %567 = vmatpush1.msra.mxu0 %v109
    %568 = vmatprep.subr.mxu0 0.0
    %569 = vmatpush1.msra.mxu0 %v110
    %570 = vmatprep.subr.mxu0 0.0
    %571 = vmatpush1.msra.mxu0 %v111
    %572 = vmatprep.subr.mxu0 0.0
    %573 = vmatpush1.msra.mxu0 %v112
    %574 = vmatprep.subr.mxu0 0.0
    %575 = vmatpush1.msra.mxu0 %v113
    %576 = vmatprep.subr.mxu0 0.0
    %577 = vmatpush1.msra.mxu0 %v114
    %578 = vmatprep.subr.mxu0 0.0
    %579 = vmatpush1.msra.mxu0 %v115
    %580 = vmatprep.subr.mxu0 0.0
    %581 = vmatpush1.msra.mxu0 %v116
    %582 = vmatprep.subr.mxu0 0.0
    %583 = vmatpush1.msra.mxu0 %v117
    %584 = vmatprep.subr.mxu0 0.0
    %585 = vmatpush1.msra.mxu0 %v118
    %586 = vmatprep.subr.mxu0 0.0
    %587 = vmatpush1.msra.mxu0 %v119
    %588 = vmatprep.subr.mxu0 0.0
    %589 = vmatpush1.msra.mxu0 %v120
    %590 = vmatprep.subr.mxu0 0.0
    %591 = vmatpush1.msra.mxu0 %v121
    %592 = vmatprep.subr.mxu0 0.0
    %593 = vmatpush1.msra.mxu0 %v122
    %594 = vmatprep.subr.mxu0 0.0
    %595 = vmatpush1.msra.mxu0 %v123
    %596 = vmatprep.subr.mxu0 0.0
    %597 = vmatpush1.msra.mxu0 %v124
    %598 = vmatprep.subr.mxu0 0.0
    %599 = vmatpush1.msra.mxu0 %v125
    %600 = vmatprep.subr.mxu0 0.0
    %601 = vmatpush1.msra.mxu0 %v126
    %602 = vmatprep.subr.mxu0 0.0
    %603 = vmatpush1.msra.mxu0 %v127
    %604 = vmatprep.subr.mxu0 0.0
    %605 = vmatpush1.msra.mxu0 %v128
    %606 = vmatprep.subr.mxu0 0.0
    %607 = vmatpush1.msra.mxu0 %v129
    %608 = vmatprep.subr.mxu0 0.0
    %609 = vmatpush1.msra.mxu0 %v130
    %610 = vmatprep.subr.mxu0 0.0
    %611 = vmatpush1.msra.mxu0 %v131
    %612 = vmatprep.subr.mxu0 0.0
    %613 = vmatpush1.msra.mxu0 %v132
    %614 = vmatprep.subr.mxu0 0.0
    %615 = vmatpush1.msra.mxu0 %v133
    %616 = vmatprep.mubr.f32.mxu0 %v549
    %617 = vmatmul.mubr.f32.gmra.mrb[0].mxu0 %v548
    %v618 = vpop.f32.mrb[0].mxu0
    %v619 = vadd.f32 %v234, %v618
    %v620 = vpop.f32.mrb[0].mxu0
    %621 = vmatprep.mubr.f32.mxu0 %v551
    %622 = vmatmul.mubr.f32.gmra.mrb[0].mxu0 %v550
    %v623 = vpop.f32.mrb[0].mxu0
    %v624 = vadd.f32 %v234, %v623
    %v625 = vpop.f32.mrb[0].mxu0
    %626 = vdwg.mxu0
    %v627 = vadd.f32 %v469, %v619
    %v628 = vadd.f32 %v470, %v624
    %629 = vadd.xlane.f32.xlu0 %v627
    %v630 = vpop.xlane.xlu0 %629
    %631 = vadd.xlane.f32.xlu0 %v628
    %v632 = vpop.xlane.xlu0 %631
    %v633 = vrcp.pop 128.0
    %v634 = vmul.f32 %v630, %v633
    %v635 = vmul.f32 %v632, %v633
    %v636 = vsub.f32 %v627, %v634
    %v637 = vsub.f32 %v628, %v635
    %v638 = vmul.f32 %v636, %v636
    %v639 = vmul.f32 %v637, %v637
    %640 = vadd.xlane.f32.xlu0 %v638
    %v641 = vpop.xlane.xlu0 %640
    %642 = vadd.xlane.f32.xlu0 %v639
    %v643 = vpop.xlane.xlu0 %642
    %v644 = vrcp.pop 127.0
    %v645 = vmul.f32 %v641, %v644
    %v646 = vmul.f32 %v643, %v644
    %v647 = vrsqrt.pop %v645
    %v648 = vmul.f32 %v645, %v647
    %vm649 = vcmp.eq.f32.partialorder %v645, inf
    %v650 = vsel %vm649, %v645, %v648
    %vm651 = vcmp.eq.f32.partialorder %v645, 0.0
    %v652 = vand.u32 %v645, 2147483648
    %v653 = vsel %vm651, %v652, %v650
    %v654 = vrsqrt.pop %v646
    %v655 = vmul.f32 %v646, %v654
    %vm656 = vcmp.eq.f32.partialorder %v646, inf
    %v657 = vsel %vm656, %v646, %v655
    %vm658 = vcmp.eq.f32.partialorder %v646, 0.0
    %v659 = vand.u32 %v646, 2147483648
    %v660 = vsel %vm658, %v659, %v657
    %v661 = vadd.f32 %v653, 1e-06
    %v662 = vadd.f32 %v660, 1e-06
    %v663 = vrcp.pop %v661
    %v664 = vrcp.pop %v662
    %v666 = vlaneseq
    %v667 = vshrl.u32 %v666, 7
    %v668 = vsub.s32 0, %v667
    %v669 = vrot.slane %v136, %v668
    %v671 = vmul.f32 %v669, %v636
    %v672 = vmul.f32 %v669, %v637
    %v673 = vmul.f32 %v671, %v663
    %v674 = vmul.f32 %v672, %v664
    %v676 = vlaneseq
    %v677 = vshrl.u32 %v676, 7
    %v678 = vsub.s32 0, %v677
    %v679 = vrot.slane %v137, %v678
    %v681 = vadd.f32 %v673, %v679
    %v682 = vadd.f32 %v674, %v679
    %683 = vst [vmem:[#allocation8] sm:$0xff] %v681
    %684 = vst [vmem:[#allocation8 + $0x8] sm:$0xff] %v682
    // Predicated region
    $region42: #{tpu_custom_call.1} parent=1 // pred_check
      _
    $region43: #{tpu_custom_call.1} parent=1 // pred_check_branch
      %686 = sbr.rel (0) target = $region45
    $region44: #{tpu_custom_call.1} parent=1 // pred_region
      %s688 = ssub.s32 256, 256
      %689 = vsyncadd [#allocation4], %s688
      %s690 = sshll.u32 [#allocation8], 4
      %s691 = int_to_ptr.vmem [resolvable:$true] %s690
      %696 = dma.vmem_to_hbm [thread:$0]  %s691, 256, %s7, [#allocation4], 128, 128, 8
    $region45: #{tpu_custom_call.1} parent=1 // pred_fallthru
      _
    // Predicated region
    $region46: #{tpu_custom_call.1} parent=1 // pred_check
      _
    $region47: #{tpu_custom_call.1} parent=1 // pred_check_branch
      %698 = sbr.rel (0) target = $region49
    $region48: #{tpu_custom_call.1} parent=1 // pred_region
      %699 = dma.done [#allocation4], 256
    $region49: #{tpu_custom_call.1} parent=1 // pred_fallthru
      _
    %700 = vsyncpa [#allocation3], 1
    %701 = vsyncpa [#allocation6], 1
    %702 = vsyncpa [#allocation4], 1

</llo_original>
